<compile_context>
chip_gen: v7x
topology: tpu7x:2x2x1
jax: 0.10.0
libtpu: 0.0.40
codegen_flags: <defaults>
</compile_context>

<pallas_src>
import math
from functools import partial

import jax
import jax.numpy as jnp
from jax.experimental import pallas as pl
from jax.experimental.pallas import tpu as pltpu


_TARGET_BLOCK_BYTES = 2 * 1024 * 1024   # ~2 MiB per x/out block (v7x-safe)
_PE_RESIDENT_BUDGET = 4 * 1024 * 1024   # keep PE fully in VMEM if it fits here


def make_pos_embedding(emb_size: int, maxlen: int, dtype=jnp.float32):
    """Deterministic buffer identical to the PyTorch __init__ (no weights)."""
    den = jnp.exp(-jnp.arange(0, emb_size, 2, dtype=jnp.float32)
                  * (math.log(10000.0) / emb_size))           # (E/2,)
    pos = jnp.arange(0, maxlen, dtype=jnp.float32)[:, None]   # (maxlen, 1)
    pe = jnp.zeros((maxlen, emb_size), dtype=jnp.float32)
    pe = pe.at[:, 0::2].set(jnp.sin(pos * den))
    pe = pe.at[:, 1::2].set(jnp.cos(pos * den))
    return pe[:, None, :].astype(dtype)                       # (maxlen, 1, E)


def _pe_add_kernel(x_ref, pe_ref, o_ref, *, tile_s, emb, batch, pe_resident):
    # x_ref / o_ref: (tile_s, batch*emb) lane-dense slabs.
    # pe_ref: (s_pad, emb) resident table  OR  (tile_s, emb) per-step tile.
    if pe_resident:
        row0 = pl.multiple_of(pl.program_id(0) * tile_s, 8)
        pe_rows = pl.ds(row0, tile_s)
    else:
        pe_rows = slice(None)
    # Broadcast the PE rows over the batch groups packed along the lane axis.
    # Static slices are free ref views; each add/store is a (tile_s, emb) slab
    # (lane-aligned when emb % 128 == 0).  `batch` is a static, modest unroll.
    for b in range(batch):
        lanes = slice(b * emb, (b + 1) * emb)
        o_ref[:, lanes] = (x_ref[:, lanes] + pe_ref[pe_rows, :]).astype(o_ref.dtype)


def positional_encoding_forward(token_embedding: jax.Array,
                                pos_embedding: jax.Array,
                                target_block_bytes: int = _TARGET_BLOCK_BYTES,
                                ) -> jax.Array:
    """token_embedding: (S, B, E);  pos_embedding: (maxlen, 1, E)."""
    S, B, E = token_embedding.shape
    dtype = token_embedding.dtype
    itemsize = jnp.dtype(dtype).itemsize

    # Lane-dense 2D view: rows = sequence positions, lanes = batch*emb.
    x2d = token_embedding.reshape(S, B * E)
    row_bytes = B * E * itemsize

    # ---- Tile selection: ~target_block_bytes per block, rows a multiple of 8,
    #      cdiv remainder handling, >= 2 grid steps when S allows (v7x 2 TCs).
    if S <= 8:
        tile_s = S
    else:
        s8 = -(-S // 8) * 8
        tile_s = max(8, (target_block_bytes // row_bytes) // 8 * 8)
        tile_s = min(tile_s, s8)
        if tile_s >= s8:  # one block would cover everything -> split for 2 TCs
            tile_s = max(8, (-(-(s8 // 2) // 8)) * 8)
    grid_s = pl.cdiv(S, tile_s)
    s_pad = grid_s * tile_s

    # ---- PE table for the first S positions, padded to the grid extent,
    #      cast once to the activation dtype (single-dtype add path on v5e).
    pe = pos_embedding[:S, 0, :].astype(dtype)                # (S, E)
    if s_pad != S:
        pe = jnp.pad(pe, ((0, s_pad - S), (0, 0)))            # (s_pad, E)

    pe_bytes = s_pad * E * itemsize
    pe_resident = pe_bytes <= _PE_RESIDENT_BUDGET
    if pe_resident:
        # Constant block index -> fetched once, stays resident across the grid.
        pe_spec = pl.BlockSpec((s_pad, E), lambda i: (0, 0))
        pe_buf_bytes = pe_bytes
    else:
        # Large S*E: stream the PE tile alongside the x tile (B x smaller DMA).
        pe_spec = pl.BlockSpec((tile_s, E), lambda i: (i, 0))
        pe_buf_bytes = tile_s * E * itemsize

    # Explicit VMEM budget: x + out blocks double-buffered, PE buffers, slack.
    block_bytes = tile_s * row_bytes
    vmem_limit = 2 * 2 * block_bytes + 2 * pe_buf_bytes + (2 << 20)
    vmem_limit = int(min(max(vmem_limit, 16 << 20), 48 << 20))

    kernel = partial(_pe_add_kernel, tile_s=tile_s, emb=E, batch=B,
                     pe_resident=pe_resident)

    out2d = pl.pallas_call(
        kernel,
        out_shape=jax.ShapeDtypeStruct((S, B * E), dtype),
        grid_spec=pl.GridSpec(
            grid=(grid_s,),
            in_specs=[
                pl.BlockSpec((tile_s, B * E), lambda i: (i, 0)),
                pe_spec,
            ],
            out_specs=pl.BlockSpec((tile_s, B * E), lambda i: (i, 0)),
        ),
        compiler_params=pltpu.CompilerParams(
            dimension_semantics=("parallel",),
            vmem_limit_bytes=vmem_limit,
        ),
    )(x2d, pe)

    return out2d.reshape(S, B, E)


if __name__ == "__main__":
    # Small shapes consistent with the module: seq=8, batch=2, emb_size=32.
    S, B, E = 8, 2, 32
    MAXLEN = 64
    DROPOUT_P = 0.1  # unused in eval-mode forward

    key = jax.random.PRNGKey(0)
    token_embedding = jax.random.normal(key, (S, B, E), dtype=jnp.float32)
    pos_embedding = make_pos_embedding(E, MAXLEN)

    out = positional_encoding_forward(token_embedding, pos_embedding)
    out = jax.block_until_ready(out)

    # Reference check in plain JAX.
    ref = token_embedding + pos_embedding[:S].astype(token_embedding.dtype)
    assert out.shape == (S, B, E)
    assert jnp.allclose(out, ref, atol=1e-6, rtol=1e-6), "mismatch vs reference"
    print("KERNEL_OK")
</pallas_src>

<mosaic_0001>
module attributes {stable_mosaic.version = 11 : i64} {
  func.func @_pe_add_kernel(%arg0: i32, %arg1: memref<8x64xf32, #tpu.memory_space<vmem>>, %arg2: memref<8x32xf32, #tpu.memory_space<vmem>>, %arg3: memref<8x64xf32, #tpu.memory_space<vmem>>) attributes {dimension_semantics = [#tpu.dimension_semantics<parallel>], iteration_bounds = array<i64: 1>, scalar_prefetch = 0 : i64, scratch_operands = 0 : i64, tpu.core_type = #tpu.core_type<tc>, window_params = [{transform_indices = @transform_0, window_bounds = array<i64: 8, 64>}, {pipeline_mode = #tpu.pipeline_mode<synchronous>, transform_indices = @transform_1, window_bounds = array<i64: 8, 32>}, {transform_indices = @transform_2, window_bounds = array<i64: 8, 64>}]} {
    %c8_i32 = arith.constant 8 : i32
    %0 = arith.muli %arg0, %c8_i32 : i32
    %1 = tpu.assume_multiple %0, 8 : i32
    %c0 = arith.constant 0 : index
    %c0_0 = arith.constant 0 : index
    %2 = vector.load %arg1[%c0, %c0_0] : memref<8x64xf32, #tpu.memory_space<vmem>>, vector<8x32xf32>
    %3 = arith.index_cast %1 : i32 to index
    %c0_1 = arith.constant 0 : index
    %4 = vector.load %arg2[%3, %c0_1] : memref<8x32xf32, #tpu.memory_space<vmem>>, vector<8x32xf32>
    %5 = arith.addf %2, %4 : vector<8x32xf32>
    %c0_2 = arith.constant 0 : index
    %c0_3 = arith.constant 0 : index
    %6 = vector.load %arg3[%c0_2, %c0_3] : memref<8x64xf32, #tpu.memory_space<vmem>>, vector<8x32xf32>
    tpu.vector_store %arg3[%c0_2, %c0_3], %5 {strides = array<i32>} : memref<8x64xf32, #tpu.memory_space<vmem>>, vector<8x32xf32>,
    %c0_4 = arith.constant 0 : index
    %c32 = arith.constant 32 : index
    %7 = vector.load %arg1[%c0_4, %c32] : memref<8x64xf32, #tpu.memory_space<vmem>>, vector<8x32xf32>
    %8 = arith.index_cast %1 : i32 to index
    %c0_5 = arith.constant 0 : index
    %9 = vector.load %arg2[%8, %c0_5] : memref<8x32xf32, #tpu.memory_space<vmem>>, vector<8x32xf32>
    %10 = arith.addf %7, %9 : vector<8x32xf32>
    %c0_6 = arith.constant 0 : index
    %c32_7 = arith.constant 32 : index
    %11 = vector.load %arg3[%c0_6, %c32_7] : memref<8x64xf32, #tpu.memory_space<vmem>>, vector<8x32xf32>
    tpu.vector_store %arg3[%c0_6, %c32_7], %10 {strides = array<i32>} : memref<8x64xf32, #tpu.memory_space<vmem>>, vector<8x32xf32>,
    return
  }
  func.func @transform_0(%arg0: i32) -> (i32, i32) {
    %c0_i32 = arith.constant 0 : i32
    %c0_i32_0 = arith.constant 0 : i32
    return %arg0, %c0_i32 : i32, i32
  }
  func.func @transform_1(%arg0: i32) -> (i32, i32) {
    %c0_i32 = arith.constant 0 : i32
    %c0_i32_0 = arith.constant 0 : i32
    %c0_i32_1 = arith.constant 0 : i32
    return %c0_i32, %c0_i32_0 : i32, i32
  }
  func.func @transform_2(%arg0: i32) -> (i32, i32) {
    %c0_i32 = arith.constant 0 : i32
    %c0_i32_0 = arith.constant 0 : i32
    return %arg0, %c0_i32 : i32, i32
  }
}

</mosaic_0001>

<llo_original>
// kernel: tpu_custom_call.1
$region0: #{tpu_custom_call.1}
  #allocation0 [shape = 'u32[]', space=smem, size = 0x4, offset = 0x4, fixed_abs, tag = 'smem constant byte address 0x4 - core index']
  #allocation1 [shape = 'u32[144,128]{1,0:T(1,128)}', space=vmem, size = 0x12000, scoped, tag = 'internal scratch']
  %s0 = inlined_call_operand.hbm [shape: f32[8,64], index: 0, kind: input, shape index: {}]
  %s1 = inlined_call_operand.hbm [shape: f32[8,32], index: 1, kind: input, shape index: {}]
  %s2 = inlined_call_operand.hbm [shape: f32[8,64], index: 2, kind: output, shape index: {}]
  %s3 = sld [smem:[#allocation0]]
  $region26: #{tpu_custom_call.1} parent=0
    _
  %s5 = ssub.s32 1, %s3
  %s6 = scalar_select 0, %s5, %s3
  $region1: #{tpu_custom_call.1} parent=0
    #allocation2 [shape = 'u8[4096]{0}', space=vmem, size = 0x1000, scoped, tag = 'input window, operand 0, single buffered']
    #allocation3 [shape = 's32[1]{0}', space=sflag, size = 0x4, scoped, tag = 'scoped memory for tpu_custom_call.1']
    #allocation4 [shape = 's32[1]{0}', space=sflag, size = 0x4, scoped, tag = 'scoped memory for tpu_custom_call.1']
    #allocation5 [shape = 'u8[4096]{0}', space=vmem, size = 0x1000, scoped, tag = 'input window, operand 1, single buffered']
    #allocation6 [shape = 's32[1]{0}', space=sflag, size = 0x4, scoped, tag = 'scoped memory for tpu_custom_call.1']
    #allocation7 [shape = 'u8[4096]{0}', space=vmem, size = 0x1000, scoped, tag = 'output window, operand 0, single buffered']
    %7 = vsyncpa [#allocation3], 0
    %8 = vsyncpa [#allocation6], 0
    %9 = vsyncpa [#allocation4], 0
    // Predicated region
    $region2: #{tpu_custom_call.1} parent=1 // pred_check
      _
    $region3: #{tpu_custom_call.1} parent=1 // pred_check_branch
      %11 = sbr.rel (0) target = $region5
    $region4: #{tpu_custom_call.1} parent=1 // pred_region
      %s13 = ssub.s32 128, 128
      %14 = vsyncadd [#allocation3], %s13
      %s16 = sshll.u32 [#allocation2], 4
      %s17 = int_to_ptr.vmem [resolvable:$true] %s16
      %19 = dma.hbm_to_vmem [thread:$0]  %s0, 128, %s17, [#allocation3]
    $region5: #{tpu_custom_call.1} parent=1 // pred_fallthru
      _
    // Predicated region
    $region6: #{tpu_custom_call.1} parent=1 // pred_check
      _
    $region7: #{tpu_custom_call.1} parent=1 // pred_check_branch
      %21 = sbr.rel (0) target = $region9
    $region8: #{tpu_custom_call.1} parent=1 // pred_region
      %s23 = ssub.s32 128, 128
      %24 = vsyncadd [#allocation6], %s23
      %s26 = sshll.u32 [#allocation5], 4
      %s27 = int_to_ptr.vmem [resolvable:$true] %s26
      %29 = dma.hbm_to_vmem [thread:$0]  %s1, 128, %s27, [#allocation6]
    $region9: #{tpu_custom_call.1} parent=1 // pred_fallthru
      _
    // Predicated region
    $region10: #{tpu_custom_call.1} parent=1 // pred_check
      _
    $region11: #{tpu_custom_call.1} parent=1 // pred_check_branch
      %31 = sbr.rel (0) target = $region13
    $region12: #{tpu_custom_call.1} parent=1 // pred_region
      %32 = dma.done [#allocation3], 128
    $region13: #{tpu_custom_call.1} parent=1 // pred_fallthru
      _
    // Predicated region
    $region14: #{tpu_custom_call.1} parent=1 // pred_check
      _
    $region15: #{tpu_custom_call.1} parent=1 // pred_check_branch
      %34 = sbr.rel (0) target = $region17
    $region16: #{tpu_custom_call.1} parent=1 // pred_region
      %35 = dma.done [#allocation6], 128
    $region17: #{tpu_custom_call.1} parent=1 // pred_fallthru
      _
    %s36 = smul.u32 0, 8
    %v37 = vld [vmem:[#allocation2] sm:$0xff]
    %s38 = scalar_lea.vmem [#allocation5], %s36
    %v39 = vld [vmem:[%s38] sm:$0xff]
    %v40 = vadd.f32 %v37, %v39
    %vm41 = vcmask 261120
    %42 = vst.msk [vmem:[#allocation7] sm:$0xff] %vm41, %v40
    %v43 = vld [vmem:[#allocation2] sm:$0xff]
    %v44 = vld [vmem:[%s38] sm:$0xff]
    %46 = vrot.lane.b32.xlu0 %v44, 32
    %v47 = vpop.permute.xlu0 %46
    %v49 = vadd.f32 %v43, %v47
    %vm50 = vcmask 523520
    %51 = vst.msk [vmem:[#allocation7] sm:$0xff] %vm50, %v49
    // Predicated region
    $region18: #{tpu_custom_call.1} parent=1 // pred_check
      _
    $region19: #{tpu_custom_call.1} parent=1 // pred_check_branch
      %53 = sbr.rel (0) target = $region21
    $region20: #{tpu_custom_call.1} parent=1 // pred_region
      %s55 = ssub.s32 128, 128
      %56 = vsyncadd [#allocation4], %s55
      %s58 = sshll.u32 [#allocation7], 4
      %s59 = int_to_ptr.vmem [resolvable:$true] %s58
      %61 = dma.vmem_to_hbm [thread:$0]  %s59, 128, %s2, [#allocation4]
    $region21: #{tpu_custom_call.1} parent=1 // pred_fallthru
      _
    // Predicated region
    $region22: #{tpu_custom_call.1} parent=1 // pred_check
      _
    $region23: #{tpu_custom_call.1} parent=1 // pred_check_branch
      %63 = sbr.rel (0) target = $region25
    $region24: #{tpu_custom_call.1} parent=1 // pred_region
      %64 = dma.done [#allocation4], 128
    $region25: #{tpu_custom_call.1} parent=1 // pred_fallthru
      _
    %65 = vsyncpa [#allocation3], 1
    %66 = vsyncpa [#allocation6], 1
    %67 = vsyncpa [#allocation4], 1

</llo_original>
